<compile_context>
chip_gen: v7x
topology: tpu7x:2x2x1
jax: 0.10.0
libtpu: 0.0.40
codegen_flags: <defaults>
</compile_context>

<pallas_src>
import jax
import jax.numpy as jnp
from jax.experimental import pallas as pl
from jax.experimental.pallas import tpu as pltpu


def _round_up(x, m):
    return (x + m - 1) // m * m


def _bal_cl_kernel(tcol_ref, row_ref, f1_ref, f2_ref, out_ref, m_scr, s_scr):
    """One (row-tile i, key-tile j) step of the balanced log-denominator.

    Scratch (per row tile, resident across the key axis j):
      m_scr (TQ,1) running row max of logits
      s_scr (TQ,1) running sum of w * exp(logits - m)

    Output (written once, at the last key tile):
      out_ref (TQ,1) = log sum_k w_k * exp(logits_k)   (balanced denominator)
    """
    i = pl.program_id(0)
    j = pl.program_id(1)
    nj = pl.num_programs(1)
    tq = f1_ref.shape[0]
    tk = f2_ref.shape[0]

    @pl.when(j == 0)
    def _init():
        m_scr[...] = jnp.full_like(m_scr, -jnp.inf)
        s_scr[...] = jnp.zeros_like(s_scr)

    # logits tile = f1_tile @ f2_tile.T ; f1 is pre-scaled by 1/temperature in the
    # wrapper, so there is no per-element multiply here. f32 MXU accumulation.
    logits = jax.lax.dot_general(
        f1_ref[...], f2_ref[...],
        dimension_numbers=(((1,), (1,)), ((), ())),
        preferred_element_type=jnp.float32,
    )                                                           # (TQ, TK)

    row = row_ref[...]                 # (3, TK) packed per-column operands (f32)
    trow = row[0:1, :]                 # targets (exact small ints / sentinels in f32)
    rc = row[1:2, :]                   # 1/count       (negative-pair weight)
    rcm1 = row[2:3, :]                 # 1/(count-1)   (positive-pair weight)

    # Balanced weights: ONE compare + ONE select per element.
    same = tcol_ref[...] == trow                                # (TQ, TK)
    w = jnp.where(same, rcm1, rc)

    m_prev = m_scr[...]
    m_new = jnp.maximum(m_prev, jnp.max(logits, axis=1, keepdims=True))
    p = jnp.exp(logits - m_new)

    # Self-pairs (the diagonal) carry weight 0.  Only tiles whose row/col ranges
    # actually intersect the diagonal pay for the iota mask.
    crosses_diag = jnp.logical_and(i * tq < (j + 1) * tk, j * tk < (i + 1) * tq)

    def _sum_with_diag(_):
        r_ids = jax.lax.broadcasted_iota(jnp.int32, (tq, tk), 0) + i * tq
        c_ids = jax.lax.broadcasted_iota(jnp.int32, (tq, tk), 1) + j * tk
        wd = jnp.where(r_ids == c_ids, 0.0, w)
        return jnp.sum(p * wd, axis=1, keepdims=True)

    def _sum_no_diag(_):
        return jnp.sum(p * w, axis=1, keepdims=True)

    s_tile = jax.lax.cond(crosses_diag, _sum_with_diag, _sum_no_diag, None)

    s_scr[...] = jnp.exp(m_prev - m_new) * s_scr[...] + s_tile
    m_scr[...] = m_new

    @pl.when(j == nj - 1)
    def _finalize():
        # Shared-with-reference caveat: if every weighted exp underflows while the
        # running max sits on a zero-weight column, log(s) -> -inf (extremely
        # unlikely with normalized features; the torch reference fails the same way).
        out_ref[...] = (m_scr[...] + jnp.log(s_scr[...])).astype(out_ref.dtype)


def bal_multimodal_cl(features1, features2, targets, *, num_classes=8,
                      temperature=0.01):
    """JAX/Pallas equivalent of Bal_MultiModal_CL.forward.

    features1, features2: (B, 2, D) float arrays (f32; bf16 accepted but see note)
    targets:              (B,) int labels in [0, num_classes)
    returns: scalar float32 loss
    """
    B, V, D = features1.shape
    assert V == 2, "module hard-codes 2 views (targets.repeat(2, 1))"
    N = B * V
    inv_temp = 1.0 / float(temperature)

    # torch.cat(torch.unbind(f, dim=1), dim=0): view-major stacking -> (N, D).
    f1 = jnp.transpose(features1, (1, 0, 2)).reshape(N, D)
    f2 = jnp.transpose(features2, (1, 0, 2)).reshape(N, D)

    # targets.repeat(2, 1): [t_0..t_{B-1}, t_0..t_{B-1}]
    tgt = jnp.tile(targets.reshape(-1).astype(jnp.int32), (2,))          # (N,)

    # Per-column class counts and their reciprocals (O(N) wrapper work).
    cls_count = jnp.zeros((num_classes,), jnp.float32).at[tgt].add(1.0)
    cnt = cls_count[tgt]                                                 # (N,)
    rc = 1.0 / cnt                                 # weight for negatives
    rcm1 = 1.0 / jnp.maximum(cnt - 1.0, 1.0)       # weight for positives (cnt >= 2)

    # Hoist the positive-side statistics out of the kernel (O(N*D) wrapper work):
    #   sum_j mask[r,j]*logits[r,j] = (f1[r].S[cls[r]] - f1[r].f2[r]) / T
    #   sum_j mask[r,j]             = cnt[r] - 1
    f1_32 = f1.astype(jnp.float32)
    f2_32 = f2.astype(jnp.float32)
    cls_sum = jnp.zeros((num_classes, D), jnp.float32).at[tgt].add(f2_32)
    pos_sum = (jnp.sum(f1_32 * cls_sum[tgt], axis=1)
               - jnp.sum(f1_32 * f2_32, axis=1)) * inv_temp
    mean_pos = pos_sum / jnp.maximum(cnt - 1.0, 1.0)                     # (N,)

    # Fold 1/temperature into the query stream (kills the O(N^2) in-kernel mul).
    f1s = (f1_32 * inv_temp).astype(f1.dtype)
    f2k = f2

    # ------------------------------ tiling ---------------------------------
    if N <= 512:
        n_pad = _round_up(N, 16)
        tq = max(n_pad // 2, 8)      # >=2 row tiles so v7x's two TCs both get work
        tk = n_pad
    else:
        tq = tk = 512                # square tiles: diag guard hits 1/nc of steps
        n_pad = _round_up(N, 512)
    pad = n_pad - N

    d_pad = _round_up(D, 128)        # lane-dense feature blocks (zero pad is exact)
    if d_pad != D:
        f1s = jnp.pad(f1s, ((0, 0), (0, d_pad - D)))
        f2k = jnp.pad(f2k, ((0, 0), (0, d_pad - D)))
    if pad:
        f1s = jnp.pad(f1s, ((0, pad), (0, 0)))     # padded rows -> zero features
        f2k = jnp.pad(f2k, ((0, pad), (0, 0)))
        # unique negative sentinels: padded entries never match any real class
        tgt = jnp.concatenate([tgt, -(jnp.arange(pad, dtype=jnp.int32) + 1)])
        rc = jnp.pad(rc, (0, pad))                  # zero weight on padded columns
        rcm1 = jnp.pad(rcm1, (0, pad))

    # Packed per-column operands: targets (as f32 - exact for small ints and the
    # negative sentinels), 1/cnt, 1/(cnt-1) -> one (3, n_pad) block, one DMA/step.
    tgt_f = tgt.astype(jnp.float32)
    tcol = tgt_f.reshape(n_pad, 1)
    rowpack = jnp.stack([tgt_f, rc, rcm1], axis=0)                       # (3, n_pad)

    nr, nc = n_pad // tq, n_pad // tk

    lse = pl.pallas_call(
        _bal_cl_kernel,
        out_shape=jax.ShapeDtypeStruct((n_pad, 1), jnp.float32),
        grid_spec=pltpu.PrefetchScalarGridSpec(
            num_scalar_prefetch=0,
            grid=(nr, nc),                              # key axis last (reduction)
            in_specs=[
                pl.BlockSpec((tq, 1), lambda i, j: (i, 0)),     # targets (column)
                pl.BlockSpec((3, tk), lambda i, j: (0, j)),     # packed row operands
                pl.BlockSpec((tq, d_pad), lambda i, j: (i, 0)),  # f1 row tile
                pl.BlockSpec((tk, d_pad), lambda i, j: (j, 0)),  # f2 key tile
            ],
            out_specs=pl.BlockSpec((tq, 1), lambda i, j: (i, 0)),
            scratch_shapes=[pltpu.VMEM((tq, 1), jnp.float32)] * 2,
        ),
        compiler_params=pltpu.CompilerParams(
            dimension_semantics=("parallel", "arbitrary"),
            vmem_limit_bytes=48 * 1024 * 1024,   # > v5e 16MiB / v6e,v7x 32MiB scope,
        ),                                       # < v7x 64MiB physical
    )(tcol, rowpack, f1s, f2k)

    # loss_row = log(balanced denominator) - mean positive logit; the padded rows
    # are garbage by design and MUST be sliced off before the mean.
    loss_rows = lse[:N, 0] - mean_pos
    return jnp.mean(loss_rows)


def _reference_loss(features1, features2, targets, num_classes=8, temperature=0.01):
    """Pure-JAX port of the PyTorch forward (for verification)."""
    B = features1.shape[0]
    tgt = jnp.concatenate([targets.reshape(-1), targets.reshape(-1)], axis=0)
    tgt = tgt.reshape(-1, 1)
    batch_cls_count = jnp.sum(jax.nn.one_hot(tgt.reshape(-1), num_classes), axis=0)
    mask = (tgt == tgt.T).astype(jnp.float32)
    logits_mask = 1.0 - jnp.eye(2 * B, dtype=jnp.float32)
    mask = mask * logits_mask
    f1 = jnp.transpose(features1, (1, 0, 2)).reshape(2 * B, -1).astype(jnp.float32)
    f2 = jnp.transpose(features2, (1, 0, 2)).reshape(2 * B, -1).astype(jnp.float32)
    logits = (f1 @ f2.T) / temperature
    logits = logits - jnp.max(logits, axis=1, keepdims=True)
    exp_logits = jnp.exp(logits) * logits_mask
    per_ins_weight = batch_cls_count[tgt.reshape(-1)].reshape(1, -1) - mask
    exp_logits_sum = jnp.sum(exp_logits / per_ins_weight, axis=1, keepdims=True)
    log_prob = logits - jnp.log(exp_logits_sum)
    mean_log_prob_pos = jnp.sum(mask * log_prob, axis=1) / jnp.sum(mask, axis=1)
    return jnp.mean(-mean_log_prob_pos)


if __name__ == "__main__":
    key = jax.random.PRNGKey(0)
    k1, k2, k3, k4, k5, k6 = jax.random.split(key, 6)

    NUM_CLASSES, TEMPERATURE = 8, 0.01

    # --- small case (2 row tiles x 1 key tile, padding, diag guard) ----------
    B, V, D = 4, 2, 32
    features1 = jax.random.normal(k1, (B, V, D), dtype=jnp.float32)
    features2 = jax.random.normal(k2, (B, V, D), dtype=jnp.float32)
    features1 = features1 / jnp.linalg.norm(features1, axis=-1, keepdims=True)
    features2 = features2 / jnp.linalg.norm(features2, axis=-1, keepdims=True)
    targets = jax.random.randint(k3, (B,), 0, NUM_CLASSES)

    loss = bal_multimodal_cl(features1, features2, targets,
                             num_classes=NUM_CLASSES, temperature=TEMPERATURE)
    loss = jax.block_until_ready(loss)
    ref = _reference_loss(features1, features2, targets, NUM_CLASSES, TEMPERATURE)
    assert jnp.allclose(loss, ref, rtol=1e-3, atol=1e-3), (loss, ref)

    # --- larger case (512x512 tiles, grid (2,2): online softmax across key tiles,
    #     off-diagonal tiles skip the iota mask, padded rows/columns) ----------
    B2, D2 = 300, 64                      # N = 600 -> padded to 1024
    f1b = jax.random.normal(k4, (B2, V, D2), dtype=jnp.float32)
    f2b = jax.random.normal(k5, (B2, V, D2), dtype=jnp.float32)
    f1b = f1b / jnp.linalg.norm(f1b, axis=-1, keepdims=True)
    f2b = f2b / jnp.linalg.norm(f2b, axis=-1, keepdims=True)
    tgt_b = jax.random.randint(k6, (B2,), 0, NUM_CLASSES)

    loss_b = bal_multimodal_cl(f1b, f2b, tgt_b,
                               num_classes=NUM_CLASSES, temperature=TEMPERATURE)
    loss_b = jax.block_until_ready(loss_b)
    ref_b = _reference_loss(f1b, f2b, tgt_b, NUM_CLASSES, TEMPERATURE)
    assert jnp.allclose(loss_b, ref_b, rtol=1e-3, atol=1e-3), (loss_b, ref_b)

    print("KERNEL_OK")
</pallas_src>

<mosaic_0001>
module attributes {stable_mosaic.version = 11 : i64} {
  func.func @_bal_cl_kernel(%arg0: i32, %arg1: i32, %arg2: memref<8x1xf32, #tpu.memory_space<vmem>>, %arg3: memref<3x16xf32, #tpu.memory_space<vmem>>, %arg4: memref<8x128xf32, #tpu.memory_space<vmem>>, %arg5: memref<16x128xf32, #tpu.memory_space<vmem>>, %arg6: memref<8x1xf32, #tpu.memory_space<vmem>>, %arg7: memref<8x1xf32, #tpu.memory_space<vmem>>, %arg8: memref<8x1xf32, #tpu.memory_space<vmem>>) attributes {dimension_semantics = [#tpu.dimension_semantics<parallel>, #tpu.dimension_semantics<arbitrary>], iteration_bounds = array<i64: 2, 1>, scalar_prefetch = 0 : i64, scratch_operands = 2 : i64, tpu.core_type = #tpu.core_type<tc>, window_params = [{transform_indices = @transform_0, window_bounds = array<i64: 8, 1>}, {transform_indices = @transform_1, window_bounds = array<i64: 3, 16>}, {transform_indices = @transform_2, window_bounds = array<i64: 8, 128>}, {transform_indices = @transform_3, window_bounds = array<i64: 16, 128>}, {transform_indices = @transform_4, window_bounds = array<i64: 8, 1>}]} {
    %c0_i32 = arith.constant 0 : i32
    %0 = arith.cmpi eq, %arg1, %c0_i32 : i32
    %1 = arith.extui %0 : i1 to i32
    %c0_i32_0 = arith.constant 0 : i32
    %2 = arith.cmpi ne, %1, %c0_i32_0 : i32
    scf.if %2 {
      %cst_23 = arith.constant 0xFF800000 : f32
      %48 = vector.broadcast %cst_23 : f32 to vector<8x1xf32>
      %c0_24 = arith.constant 0 : index
      %c0_25 = arith.constant 0 : index
      %49 = vector.load %arg7[%c0_24, %c0_25] : memref<8x1xf32, #tpu.memory_space<vmem>>, vector<8x1xf32>
      tpu.vector_store %arg7[%c0_24, %c0_25], %48 {strides = array<i32>} : memref<8x1xf32, #tpu.memory_space<vmem>>, vector<8x1xf32>,
      %cst_26 = arith.constant 0.000000e+00 : f32
      %50 = vector.broadcast %cst_26 : f32 to vector<8x1xf32>
      %c0_27 = arith.constant 0 : index
      %c0_28 = arith.constant 0 : index
      %51 = vector.load %arg8[%c0_27, %c0_28] : memref<8x1xf32, #tpu.memory_space<vmem>>, vector<8x1xf32>
      tpu.vector_store %arg8[%c0_27, %c0_28], %50 {strides = array<i32>} : memref<8x1xf32, #tpu.memory_space<vmem>>, vector<8x1xf32>,
    } else {
    }
    %c0 = arith.constant 0 : index
    %c0_1 = arith.constant 0 : index
    %3 = vector.load %arg4[%c0, %c0_1] : memref<8x128xf32, #tpu.memory_space<vmem>>, vector<8x128xf32>
    %c0_2 = arith.constant 0 : index
    %c0_3 = arith.constant 0 : index
    %4 = vector.load %arg5[%c0_2, %c0_3] : memref<16x128xf32, #tpu.memory_space<vmem>>, vector<16x128xf32>
    %cst = arith.constant dense<0.000000e+00> : vector<8x16xf32>
    %5 = tpu.matmul %3, %4, %cst {dimension_numbers = #tpu.dot_dimension_numbers<[1], [1], [0], [0], [0, 0, 1, 0], [], []>} : vector<8x128xf32>, vector<16x128xf32>, vector<8x16xf32> -> vector<8x16xf32>
    %c0_4 = arith.constant 0 : index
    %c0_5 = arith.constant 0 : index
    %6 = vector.load %arg3[%c0_4, %c0_5] : memref<3x16xf32, #tpu.memory_space<vmem>>, vector<3x16xf32>
    %7 = vector.extract_strided_slice %6 {offsets = [0, 0], sizes = [1, 16], strides = [1, 1]} : vector<3x16xf32> to vector<1x16xf32>
    %8 = vector.extract_strided_slice %6 {offsets = [1, 0], sizes = [1, 16], strides = [1, 1]} : vector<3x16xf32> to vector<1x16xf32>
    %9 = vector.extract_strided_slice %6 {offsets = [2, 0], sizes = [1, 16], strides = [1, 1]} : vector<3x16xf32> to vector<1x16xf32>
    %c0_6 = arith.constant 0 : index
    %c0_7 = arith.constant 0 : index
    %10 = vector.load %arg2[%c0_6, %c0_7] : memref<8x1xf32, #tpu.memory_space<vmem>>, vector<8x1xf32>
    %11 = vector.broadcast %10 : vector<8x1xf32> to vector<8x16xf32>
    %12 = vector.broadcast %7 : vector<1x16xf32> to vector<8x16xf32>
    %13 = arith.cmpf oeq, %11, %12 : vector<8x16xf32>
    %14 = vector.shape_cast %9 : vector<1x16xf32> to vector<1x16xf32>
    %15 = vector.broadcast %14 : vector<1x16xf32> to vector<8x16xf32>
    %16 = vector.shape_cast %8 : vector<1x16xf32> to vector<1x16xf32>
    %17 = vector.broadcast %16 : vector<1x16xf32> to vector<8x16xf32>
    %18 = arith.select %13, %15, %17 : vector<8x16xi1>, vector<8x16xf32>
    %c0_8 = arith.constant 0 : index
    %c0_9 = arith.constant 0 : index
    %19 = vector.load %arg7[%c0_8, %c0_9] : memref<8x1xf32, #tpu.memory_space<vmem>>, vector<8x1xf32>
    %cst_10 = arith.constant dense<0xFF800000> : vector<8xf32>
    %20 = vector.multi_reduction <maximumf>, %5, %cst_10 [1] : vector<8x16xf32> to vector<8xf32>
    %21 = vector.shape_cast %20 : vector<8xf32> to vector<8x1xf32>
    %22 = arith.maximumf %19, %21 : vector<8x1xf32>
    %23 = vector.broadcast %22 : vector<8x1xf32> to vector<8x16xf32>
    %24 = arith.subf %5, %23 : vector<8x16xf32>
    %25 = math.exp %24 : vector<8x16xf32>
    %c8_i32 = arith.constant 8 : i32
    %26 = arith.muli %arg0, %c8_i32 : i32
    %c1_i32 = arith.constant 1 : i32
    %27 = arith.addi %arg1, %c1_i32 : i32
    %c16_i32 = arith.constant 16 : i32
    %28 = arith.muli %27, %c16_i32 : i32
    %29 = arith.cmpi slt, %26, %28 : i32
    %c16_i32_11 = arith.constant 16 : i32
    %30 = arith.muli %arg1, %c16_i32_11 : i32
    %c1_i32_12 = arith.constant 1 : i32
    %31 = arith.addi %arg0, %c1_i32_12 : i32
    %c8_i32_13 = arith.constant 8 : i32
    %32 = arith.muli %31, %c8_i32_13 : i32
    %33 = arith.cmpi slt, %30, %32 : i32
    %34 = arith.andi %29, %33 : i1
    %35 = arith.extui %34 : i1 to i32
    %c0_i32_14 = arith.constant 0 : i32
    %36 = arith.cmpi ne, %35, %c0_i32_14 : i32
    %37 = scf.if %36 -> (vector<8x1xf32>) {
      %48 = tpu.iota {dimensions = array<i32: 0>} : vector<8x16xi32>
      %c8_i32_23 = arith.constant 8 : i32
      %49 = arith.muli %arg0, %c8_i32_23 : i32
      %50 = vector.broadcast %49 : i32 to vector<8x16xi32>
      %51 = arith.addi %48, %50 : vector<8x16xi32>
      %52 = tpu.iota {dimensions = array<i32: 1>} : vector<8x16xi32>
      %c16_i32_24 = arith.constant 16 : i32
      %53 = arith.muli %arg1, %c16_i32_24 : i32
      %54 = vector.broadcast %53 : i32 to vector<8x16xi32>
      %55 = arith.addi %52, %54 : vector<8x16xi32>
      %56 = arith.cmpi eq, %51, %55 : vector<8x16xi32>
      %cst_25 = arith.constant 0.000000e+00 : f32
      %57 = vector.broadcast %cst_25 : f32 to vector<8x16xf32>
      %58 = arith.select %56, %57, %18 : vector<8x16xi1>, vector<8x16xf32>
      %59 = arith.mulf %25, %58 : vector<8x16xf32>
      %cst_26 = arith.constant dense<0.000000e+00> : vector<8xf32>
      %60 = vector.multi_reduction <add>, %59, %cst_26 [1] : vector<8x16xf32> to vector<8xf32>
      %61 = vector.shape_cast %60 : vector<8xf32> to vector<8x1xf32>
      scf.yield %61 : vector<8x1xf32>
    } else {
      %48 = arith.mulf %25, %18 : vector<8x16xf32>
      %cst_23 = arith.constant dense<0.000000e+00> : vector<8xf32>
      %49 = vector.multi_reduction <add>, %48, %cst_23 [1] : vector<8x16xf32> to vector<8xf32>
      %50 = vector.shape_cast %49 : vector<8xf32> to vector<8x1xf32>
      scf.yield %50 : vector<8x1xf32>
    }
    %38 = arith.subf %19, %22 : vector<8x1xf32>
    %39 = math.exp %38 : vector<8x1xf32>
    %c0_15 = arith.constant 0 : index
    %c0_16 = arith.constant 0 : index
    %40 = vector.load %arg8[%c0_15, %c0_16] : memref<8x1xf32, #tpu.memory_space<vmem>>, vector<8x1xf32>
    %41 = arith.mulf %39, %40 : vector<8x1xf32>
    %42 = arith.addf %41, %37 : vector<8x1xf32>
    %c0_17 = arith.constant 0 : index
    %c0_18 = arith.constant 0 : index
    %43 = vector.load %arg8[%c0_17, %c0_18] : memref<8x1xf32, #tpu.memory_space<vmem>>, vector<8x1xf32>
    tpu.vector_store %arg8[%c0_17, %c0_18], %42 {strides = array<i32>} : memref<8x1xf32, #tpu.memory_space<vmem>>, vector<8x1xf32>,
    %c0_19 = arith.constant 0 : index
    %c0_20 = arith.constant 0 : index
    %44 = vector.load %arg7[%c0_19, %c0_20] : memref<8x1xf32, #tpu.memory_space<vmem>>, vector<8x1xf32>
    tpu.vector_store %arg7[%c0_19, %c0_20], %22 {strides = array<i32>} : memref<8x1xf32, #tpu.memory_space<vmem>>, vector<8x1xf32>,
    %c0_i32_21 = arith.constant 0 : i32
    %45 = arith.cmpi eq, %arg1, %c0_i32_21 : i32
    %46 = arith.extui %45 : i1 to i32
    %c0_i32_22 = arith.constant 0 : i32
    %47 = arith.cmpi ne, %46, %c0_i32_22 : i32
    scf.if %47 {
      %c0_23 = arith.constant 0 : index
      %c0_24 = arith.constant 0 : index
      %48 = vector.load %arg7[%c0_23, %c0_24] : memref<8x1xf32, #tpu.memory_space<vmem>>, vector<8x1xf32>
      %c0_25 = arith.constant 0 : index
      %c0_26 = arith.constant 0 : index
      %49 = vector.load %arg8[%c0_25, %c0_26] : memref<8x1xf32, #tpu.memory_space<vmem>>, vector<8x1xf32>
      %50 = math.log %49 : vector<8x1xf32>
      %51 = arith.addf %48, %50 : vector<8x1xf32>
      %c0_27 = arith.constant 0 : index
      %c0_28 = arith.constant 0 : index
      %52 = vector.load %arg6[%c0_27, %c0_28] : memref<8x1xf32, #tpu.memory_space<vmem>>, vector<8x1xf32>
      tpu.vector_store %arg6[%c0_27, %c0_28], %51 {strides = array<i32>} : memref<8x1xf32, #tpu.memory_space<vmem>>, vector<8x1xf32>,
    } else {
    }
    return
  }
  func.func @transform_0(%arg0: i32, %arg1: i32) -> (i32, i32) {
    %c0_i32 = arith.constant 0 : i32
    %c0_i32_0 = arith.constant 0 : i32
    return %arg0, %c0_i32 : i32, i32
  }
  func.func @transform_1(%arg0: i32, %arg1: i32) -> (i32, i32) {
    %c0_i32 = arith.constant 0 : i32
    %c0_i32_0 = arith.constant 0 : i32
    return %c0_i32, %arg1 : i32, i32
  }
  func.func @transform_2(%arg0: i32, %arg1: i32) -> (i32, i32) {
    %c0_i32 = arith.constant 0 : i32
    %c0_i32_0 = arith.constant 0 : i32
    return %arg0, %c0_i32 : i32, i32
  }
  func.func @transform_3(%arg0: i32, %arg1: i32) -> (i32, i32) {
    %c0_i32 = arith.constant 0 : i32
    %c0_i32_0 = arith.constant 0 : i32
    return %arg1, %c0_i32 : i32, i32
  }
  func.func @transform_4(%arg0: i32, %arg1: i32) -> (i32, i32) {
    %c0_i32 = arith.constant 0 : i32
    %c0_i32_0 = arith.constant 0 : i32
    return %arg0, %c0_i32 : i32, i32
  }
}

</mosaic_0001>

<llo_original>
// kernel: tpu_custom_call.1
$region0: #{tpu_custom_call.1}
  #allocation0 [shape = 'u32[]', space=smem, size = 0x4, offset = 0x4, fixed_abs, tag = 'smem constant byte address 0x4 - core index']
  #allocation1 [shape = 'u32[144,128]{1,0:T(1,128)}', space=vmem, size = 0x12000, scoped, tag = 'internal scratch']
  #allocation2 [shape = 'f32[8,1]{1,0:T(8,128)}', space=vmem, size = 0x1000, scoped, tag = 'scratch operand']
  #allocation3 [shape = 'f32[8,1]{1,0:T(8,128)}', space=vmem, size = 0x1000, scoped, tag = 'scratch operand']
  %s0 = inlined_call_operand.vmem [shape: f32[16,1], index: 0, kind: input, shape index: {}]
  %s1 = inlined_call_operand.vmem [shape: f32[3,16], index: 1, kind: input, shape index: {}]
  %s2 = inlined_call_operand.vmem [shape: f32[16,128], index: 2, kind: input, shape index: {}]
  %s3 = inlined_call_operand.hbm [shape: f32[16,128], index: 3, kind: input, shape index: {}]
  %s4 = inlined_call_operand.vmem [shape: f32[16,1], index: 4, kind: output, shape index: {}]
  %s5 = sld [smem:[#allocation0]]
  $region69: #{tpu_custom_call.1} parent=0
    _
  %s7 = ssub.s32 1, %s5
  %s8 = scalar_select 0, %s7, %s5
  $region1: #{tpu_custom_call.1} parent=0
    #allocation4 [shape = 'u8[8192]{0}', space=vmem, size = 0x2000, scoped, tag = 'input window, operand 3, single buffered']
    #allocation5 [shape = 's32[2]{0}', space=sflag, size = 0x8, scoped, tag = 'scoped memory for tpu_custom_call.1']
    %9 = vsyncpa [#allocation5], 0
    loop: start=0, step=1, limit=4
    $region2: #{tpu_custom_call.1} parent=1 // loop_pre_header
      _
    $region3: #{tpu_custom_call.1} parent=1 // loop_header
      %s11 = sphi 0, %s15
      %p12 = scmp.ge.s32.totalorder %s11, 4
      %s18 = sphi 0, %s30
      %s19 = sphi 0, %s26
      %s20 = sphi 0, %s18
      %s21 = sphi 0, %s19
      %s22 = sphi 0, %s20
      %s23 = sphi 0, %s21
      %s33 = sphi 0, %s35
      %s36 = sphi 0, %s33
      %s37 = sphi 0, %s36
      %s53 = sphi 0, %s37
      %s59 = sphi 0, %s61
      %s62 = sphi 0, %s59
      %s63 = sphi 0, %s62
      %s79 = sphi 0, %s63
      %s85 = sphi 0, %s87
      %s88 = sphi 0, %s85
      %s89 = sphi 0, %s88
      %s105 = sphi 0, %s89
      %s111 = sphi 0, %s113
      %s114 = sphi 0, %s111
      %s115 = sphi 0, %s114
      %s131 = sphi 0, %s115
      %s137 = sphi 0, %s139
      %s140 = sphi 0, %s137
      %s141 = sphi 0, %s140
      %s157 = sphi 0, %s141
    $region4: #{tpu_custom_call.1} parent=1 // loop_header_branch
      %14 = sbr.rel (%p12) target = $region8
    $region5: #{tpu_custom_call.1} parent=1 // loop_body
      %s16 = ssub.s32 %s11, 1
      %s17 = ssub.s32 %s11, 2
      %s24 = sadd.s32 1, %s19
      %p25 = scmp.ge.s32.totalorder %s24, 1
      %s26 = scalar_select %p25, 0, %s24
      %s27 = sadd.s32 1, %s18
      %s28 = scalar_select %p25, %s27, %s18
      %p29 = scmp.ge.s32.totalorder %s28, 2
      %s30 = scalar_select %p29, 0, %s28
      %s31 = ssub.s32 %s18, %s30
      %p32 = scmp.eq.s32.totalorder %s31, 0
      %s34 = sadd.s32 %s33, 1
      %s35 = scalar_select %p32, %s33, %s34
      %p38 = pneg %p32
      %p39 = scmp.eq.s32.totalorder %s11, 1
      %p40 = por %p38, %p39
      %p41 = scmp.ne.s32.totalorder %s33, %s36
      %p42 = scmp.eq.s32.totalorder %s11, 0
      %p43 = por %p41, %p42
      %p44 = scmp.ne.s32.totalorder %s33, %s36
      %p45 = scmp.eq.s32.totalorder %s16, 1
      %p46 = por %p44, %p45
      %p47 = scmp.ne.s32.totalorder %s36, %s37
      %p48 = scmp.eq.s32.totalorder %s16, 0
      %p49 = por %p47, %p48
      %p50 = scmp.ne.s32.totalorder %s36, %s37
      %p51 = scmp.eq.s32.totalorder %s17, 1
      %p52 = por %p50, %p51
      %p54 = scmp.ne.s32.totalorder %s37, %s53
      %p55 = scmp.eq.s32.totalorder %s17, 0
      %p56 = por %p54, %p55
      %s57 = ssub.s32 %s19, %s26
      %p58 = scmp.eq.s32.totalorder %s57, 0
      %s60 = sadd.s32 %s59, 1
      %s61 = scalar_select %p58, %s59, %s60
      %p64 = pneg %p58
      %p65 = scmp.eq.s32.totalorder %s11, 1
      %p66 = por %p64, %p65
      %p67 = scmp.ne.s32.totalorder %s59, %s62
      %p68 = scmp.eq.s32.totalorder %s11, 0
      %p69 = por %p67, %p68
      %p70 = scmp.ne.s32.totalorder %s59, %s62
      %p71 = scmp.eq.s32.totalorder %s16, 1
      %p72 = por %p70, %p71
      %p73 = scmp.ne.s32.totalorder %s62, %s63
      %p74 = scmp.eq.s32.totalorder %s16, 0
      %p75 = por %p73, %p74
      %p76 = scmp.ne.s32.totalorder %s62, %s63
      %p77 = scmp.eq.s32.totalorder %s17, 1
      %p78 = por %p76, %p77
      %p80 = scmp.ne.s32.totalorder %s63, %s79
      %p81 = scmp.eq.s32.totalorder %s17, 0
      %p82 = por %p80, %p81
      %s83 = ssub.s32 %s18, %s30
      %p84 = scmp.eq.s32.totalorder %s83, 0
      %s86 = sadd.s32 %s85, 1
      %s87 = scalar_select %p84, %s85, %s86
      %p90 = pneg %p84
      %p91 = scmp.eq.s32.totalorder %s11, 1
      %p92 = por %p90, %p91
      %p93 = scmp.ne.s32.totalorder %s85, %s88
      %p94 = scmp.eq.s32.totalorder %s11, 0
      %p95 = por %p93, %p94
      %p96 = scmp.ne.s32.totalorder %s85, %s88
      %p97 = scmp.eq.s32.totalorder %s16, 1
      %p98 = por %p96, %p97
      %p99 = scmp.ne.s32.totalorder %s88, %s89
      %p100 = scmp.eq.s32.totalorder %s16, 0
      %p101 = por %p99, %p100
      %p102 = scmp.ne.s32.totalorder %s88, %s89
      %p103 = scmp.eq.s32.totalorder %s17, 1
      %p104 = por %p102, %p103
      %p106 = scmp.ne.s32.totalorder %s89, %s105
      %p107 = scmp.eq.s32.totalorder %s17, 0
      %p108 = por %p106, %p107
      %s109 = ssub.s32 %s19, %s26
      %p110 = scmp.eq.s32.totalorder %s109, 0
      %s112 = sadd.s32 %s111, 1
      %s113 = scalar_select %p110, %s111, %s112
      %p116 = pneg %p110
      %p117 = scmp.eq.s32.totalorder %s11, 1
      %p118 = por %p116, %p117
      %p119 = scmp.ne.s32.totalorder %s111, %s114
      %p120 = scmp.eq.s32.totalorder %s11, 0
      %p121 = por %p119, %p120
      %p122 = scmp.ne.s32.totalorder %s111, %s114
      %p123 = scmp.eq.s32.totalorder %s16, 1
      %p124 = por %p122, %p123
      %p125 = scmp.ne.s32.totalorder %s114, %s115
      %p126 = scmp.eq.s32.totalorder %s16, 0
      %p127 = por %p125, %p126
      %p128 = scmp.ne.s32.totalorder %s114, %s115
      %p129 = scmp.eq.s32.totalorder %s17, 1
      %p130 = por %p128, %p129
      %p132 = scmp.ne.s32.totalorder %s115, %s131
      %p133 = scmp.eq.s32.totalorder %s17, 0
      %p134 = por %p132, %p133
      %s135 = ssub.s32 %s18, %s30
      %p136 = scmp.eq.s32.totalorder %s135, 0
      %s138 = sadd.s32 %s137, 1
      %s139 = scalar_select %p136, %s137, %s138
      %p142 = pneg %p136
      %p143 = scmp.eq.s32.totalorder %s11, 1
      %p144 = por %p142, %p143
      %p145 = scmp.ne.s32.totalorder %s137, %s140
      %p146 = scmp.eq.s32.totalorder %s11, 0
      %p147 = por %p145, %p146
      %p148 = scmp.ne.s32.totalorder %s137, %s140
      %p149 = scmp.eq.s32.totalorder %s16, 1
      %p150 = por %p148, %p149
      %p151 = scmp.ne.s32.totalorder %s140, %s141
      %p152 = scmp.eq.s32.totalorder %s16, 0
      %p153 = por %p151, %p152
      %p154 = scmp.ne.s32.totalorder %s140, %s141
      %p155 = scmp.eq.s32.totalorder %s17, 1
      %p156 = por %p154, %p155
      %p158 = scmp.ne.s32.totalorder %s141, %s157
      %p159 = scmp.eq.s32.totalorder %s17, 0
      %p160 = por %p158, %p159
      %p161 = scmp.le.s32.totalorder 1, %s11
      %p162 = scmp.lt.s32.totalorder %s11, 3
      %p163 = pnand %p161, %p162
      %p164 = pneg %p163
      // Predicated region
      $region9: #{tpu_custom_call.1} parent=5 // pred_check
        _
      $region10: #{tpu_custom_call.1} parent=5 // pred_check_branch
        %166 = sbr.rel (%p163) target = $region12
      $region11: #{tpu_custom_call.1} parent=5 // pred_region
        %s167 = ssub.s32 %s11, 1
        // Predicated region
        $region13: #{tpu_custom_call.1} parent=11 // pred_check
          %p168 = pneg %p75
        $region14: #{tpu_custom_call.1} parent=11 // pred_check_branch
          %170 = sbr.rel (%p168) target = $region16
        $region15: #{tpu_custom_call.1} parent=11 // pred_region
          %p171 = scmp.lt.s32.totalorder %s21, 0
          %s172 = scalar_select %p171, %s21, 0
          %s173 = smul.addr %s172, 4
          %s174 = scalar_lea.vmem %s1, %s173
        $region16: #{tpu_custom_call.1} parent=11 // pred_fallthru
          _
        // Predicated region
        $region17: #{tpu_custom_call.1} parent=11 // pred_check
          %p175 = pneg %p127
        $region18: #{tpu_custom_call.1} parent=11 // pred_check_branch
          %177 = sbr.rel (%p175) target = $region20
        $region19: #{tpu_custom_call.1} parent=11 // pred_region
          %s178 = smul.u32 2, %s21
          %s180 = ssub.s32 256, 256
          %181 = vsyncadd [#allocation5], %s180
          %s182 = smul.addr %s178, 128
          %s183 = scalar_lea.hbm %s3, %s182
          %s184 = sshll.u32 [#allocation4], 4
          %s185 = int_to_ptr.vmem [resolvable:$true] %s184
          %190 = dma.hbm_to_vmem [thread:$0]  %s183, 256, %s185, [#allocation5], 128, 128, 8
        $region20: #{tpu_custom_call.1} parent=11 // pred_fallthru
          _
      $region12: #{tpu_custom_call.1} parent=5 // pred_fallthru
        _
      %p191 = scmp.lt.s32.totalorder %s11, 2
      // Predicated region
      $region21: #{tpu_custom_call.1} parent=5 // pred_check
        %p192 = pneg %p191
      $region22: #{tpu_custom_call.1} parent=5 // pred_check_branch
        %194 = sbr.rel (%p192) target = $region24
      $region23: #{tpu_custom_call.1} parent=5 // pred_region
        // Predicated region
        $region25: #{tpu_custom_call.1} parent=23 // pred_check
          %p195 = pneg %p43
        $region26: #{tpu_custom_call.1} parent=23 // pred_check_branch
          %197 = sbr.rel (%p195) target = $region28
        $region27: #{tpu_custom_call.1} parent=23 // pred_region
          %p198 = scmp.lt.s32.totalorder %s18, 1
          %s199 = scalar_select %p198, %s18, 1
          %s200 = smul.addr %s199, 8
          %s201 = scalar_lea.vmem %s0, %s200
        $region28: #{tpu_custom_call.1} parent=23 // pred_fallthru
          _
        // Predicated region
        $region29: #{tpu_custom_call.1} parent=23 // pred_check
          %p202 = pneg %p95
        $region30: #{tpu_custom_call.1} parent=23 // pred_check_branch
          %204 = sbr.rel (%p202) target = $region32
        $region31: #{tpu_custom_call.1} parent=23 // pred_region
          %p205 = scmp.lt.s32.totalorder %s18, 1
          %s206 = scalar_select %p205, %s18, 1
          %s207 = smul.addr %s206, 8
          %s208 = scalar_lea.vmem %s2, %s207
        $region32: #{tpu_custom_call.1} parent=23 // pred_fallthru
          _
      $region24: #{tpu_custom_call.1} parent=5 // pred_fallthru
        _
      %p209 = scmp.le.s32.totalorder 1, %s11
      %p210 = scmp.lt.s32.totalorder %s11, 3
      %p211 = pnand %p209, %p210
      %p212 = pneg %p211
      // Predicated region
      $region33: #{tpu_custom_call.1} parent=5 // pred_check
        _
      $region34: #{tpu_custom_call.1} parent=5 // pred_check_branch
        %214 = sbr.rel (%p211) target = $region36
      $region35: #{tpu_custom_call.1} parent=5 // pred_region
        %s215 = ssub.s32 %s11, 1
        // Predicated region
        $region37: #{tpu_custom_call.1} parent=35 // pred_check
          %p216 = pneg %p127
        $region38: #{tpu_custom_call.1} parent=35 // pred_check_branch
          %218 = sbr.rel (%p216) target = $region40
        $region39: #{tpu_custom_call.1} parent=35 // pred_region
          %219 = dma.done [#allocation5], 256
        $region40: #{tpu_custom_call.1} parent=35 // pred_fallthru
          _
        %p220 = scmp.lt.s32.totalorder %s20, 1
        %s221 = scalar_select %p220, %s20, 1
        %s222 = smul.addr %s221, 8
        %s223 = scalar_lea.vmem %s0, %s222
        %p224 = pneg %p49
        %p225 = pneg %p46
        %p226 = scmp.lt.s32.totalorder %s21, 0
        %s227 = scalar_select %p226, %s21, 0
        %s228 = smul.addr %s227, 4
        %s229 = scalar_lea.vmem %s1, %s228
        %p230 = pneg %p75
        %p231 = pneg %p72
        %p232 = scmp.lt.s32.totalorder %s20, 1
        %s233 = scalar_select %p232, %s20, 1
        %s234 = smul.addr %s233, 8
        %s235 = scalar_lea.vmem %s2, %s234
        %p236 = pneg %p101
        %p237 = pneg %p98
        %p238 = pneg %p127
        %p239 = pneg %p124
        %p240 = pneg %p153
        %p241 = pneg %p150
        %p242 = scmp.lt.s32.totalorder %s20, 1
        %s243 = scalar_select %p242, %s20, 1
        %s244 = smul.addr %s243, 8
        %s245 = scalar_lea.vmem %s4, %s244
        %p246 = scmp.lt.s32.totalorder %s20, 1
        %s247 = scalar_select %p246, %s20, 1
        %s248 = smul.addr %s247, 8
        %s249 = scalar_lea.vmem %s0, %s248
        %p250 = scmp.lt.s32.totalorder %s21, 0
        %s251 = scalar_select %p250, %s21, 0
        %s252 = smul.addr %s251, 4
        %s253 = scalar_lea.vmem %s1, %s252
        %p254 = scmp.lt.s32.totalorder %s20, 1
        %s255 = scalar_select %p254, %s20, 1
        %s256 = smul.addr %s255, 8
        %s257 = scalar_lea.vmem %s2, %s256
        %s258 = smul.u32 2, %s21
        %p259 = scmp.lt.s32.totalorder %s20, 1
        %s260 = scalar_select %p259, %s20, 1
        %s261 = smul.addr %s260, 8
        %s262 = scalar_lea.vmem %s4, %s261
        %p263 = scmp.eq.s32.totalorder %s21, 0
        // Predicated region
        $region41: #{tpu_custom_call.1} parent=35 // pred_check
          %p264 = pneg %p263
        $region42: #{tpu_custom_call.1} parent=35 // pred_check_branch
          %266 = sbr.rel (%p264) target = $region44
        $region43: #{tpu_custom_call.1} parent=35 // pred_region
          %vm267 = vcmask 7168
          %268 = vst.msk [vmem:[#allocation2] sm:$0xff] %vm267, -inf
          %269 = vst.msk [vmem:[#allocation3] sm:$0xff] %vm267, 0.0
        $region44: #{tpu_custom_call.1} parent=35 // pred_fallthru
          _
        %v270 = vld [vmem:[%s257] sm:$0xff]
        %v271 = vld [vmem:[#allocation4] sm:$0xff]
        %v272 = vld [vmem:[#allocation4 + $0x8] sm:$0xff]
        %273 = vmatprep.subr.mxu0 0.0
        %274 = vmatpush1.xpose.msra.mxu0 %v271
        %275 = vmatprep.subr.mxu0 0.0
        %276 = vmatpush1.xpose.msra.mxu0 %v272
        %277 = vmatprep.subr.mxu0 0.0
        %278 = vmatpush1.xpose.msra.mxu0 0.0
        %279 = vmatprep.subr.mxu0 0.0
        %280 = vmatpush1.xpose.msra.mxu0 0.0
        %281 = vmatprep.subr.mxu0 0.0
        %282 = vmatpush1.xpose.msra.mxu0 0.0
        %283 = vmatprep.subr.mxu0 0.0
        %284 = vmatpush1.xpose.msra.mxu0 0.0
        %285 = vmatprep.subr.mxu0 0.0
        %286 = vmatpush1.xpose.msra.mxu0 0.0
        %287 = vmatprep.subr.mxu0 0.0
        %288 = vmatpush1.xpose.msra.mxu0 0.0
        %289 = vmatprep.subr.mxu0 0.0
        %290 = vmatpush1.xpose.msra.mxu0 0.0
        %291 = vmatprep.subr.mxu0 0.0
        %292 = vmatpush1.xpose.msra.mxu0 0.0
        %293 = vmatprep.subr.mxu0 0.0
        %294 = vmatpush1.xpose.msra.mxu0 0.0
        %295 = vmatprep.subr.mxu0 0.0
        %296 = vmatpush1.xpose.msra.mxu0 0.0
        %297 = vmatprep.subr.mxu0 0.0
        %298 = vmatpush1.xpose.msra.mxu0 0.0
        %299 = vmatprep.subr.mxu0 0.0
        %300 = vmatpush1.xpose.msra.mxu0 0.0
        %301 = vmatprep.subr.mxu0 0.0
        %302 = vmatpush1.xpose.msra.mxu0 0.0
        %303 = vmatprep.subr.mxu0 0.0
        %304 = vmatpush1.xpose.msra.mxu0 0.0
        %305 = vmatprep.subr.mxu0 0.0
        %306 = vmatpush1.xpose.msra.mxu0 0.0
        %307 = vmatprep.subr.mxu0 0.0
        %308 = vmatpush1.xpose.msra.mxu0 0.0
        %309 = vmatprep.subr.mxu0 0.0
        %310 = vmatpush1.xpose.msra.mxu0 0.0
        %311 = vmatprep.subr.mxu0 0.0
        %312 = vmatpush1.xpose.msra.mxu0 0.0
        %313 = vmatprep.subr.mxu0 0.0
        %314 = vmatpush1.xpose.msra.mxu0 0.0
        %315 = vmatprep.subr.mxu0 0.0
        %316 = vmatpush1.xpose.msra.mxu0 0.0
        %317 = vmatprep.subr.mxu0 0.0
        %318 = vmatpush1.xpose.msra.mxu0 0.0
        %319 = vmatprep.subr.mxu0 0.0
        %320 = vmatpush1.xpose.msra.mxu0 0.0
        %321 = vmatprep.subr.mxu0 0.0
        %322 = vmatpush1.xpose.msra.mxu0 0.0
        %323 = vmatprep.subr.mxu0 0.0
        %324 = vmatpush1.xpose.msra.mxu0 0.0
        %325 = vmatprep.subr.mxu0 0.0
        %326 = vmatpush1.xpose.msra.mxu0 0.0
        %327 = vmatprep.subr.mxu0 0.0
        %328 = vmatpush1.xpose.msra.mxu0 0.0
        %329 = vmatprep.subr.mxu0 0.0
        %330 = vmatpush1.xpose.msra.mxu0 0.0
        %331 = vmatprep.subr.mxu0 0.0
        %332 = vmatpush1.xpose.msra.mxu0 0.0
        %333 = vmatprep.subr.mxu0 0.0
        %334 = vmatpush1.xpose.msra.mxu0 0.0
        %335 = vmatprep.subr.mxu0 0.0
        %336 = vmatpush1.xpose.msra.mxu0 0.0
        %337 = vmatprep.mubr.f32.mxu0 0.0
        %338 = vmatmul.mubr.f32.gmra.mrb[0].mxu0 %v270
        %v339 = vpop.f32.mrb[0].mxu0
        %v340 = vadd.f32 0.0, %v339
        %v341 = vpop.f32.mrb[0].mxu0
        %342 = vdwg.mxu0
        %v343 = vld [vmem:[%s253] sm:$0x7]
        %v344 = vld [vmem:[%s249] sm:$0xff]
        %346 = vset.pattern.permute.xlu0 0
        %347 = vperm.xlu0 %346, %v344
        %v348 = vpop.permute.xlu0 %347
        %v350 = vlaneseq
        %v351 = vshrl.u32 %v350, 7
        %v352 = vsub.s32 0, %v351
        %v353 = vrot.slane %v343, %v352
        %vm354 = vcmp.eq.f32.partialorder %v348, %v353
        %v355 = vlaneseq
        %v356 = vshrl.u32 %v355, 7
        %v357 = vsub.s32 2, %v356
        %v358 = vrot.slane %v343, %v357
        %v359 = vlaneseq
        %v360 = vshrl.u32 %v359, 7
        %v361 = vsub.s32 1, %v360
        %v362 = vrot.slane %v343, %v361
        %v363 = vsel %vm354, %v358, %v362
        %v364 = vld [vmem:[#allocation2] sm:$0xff]
        %vm365 = vcmask 130048
        %v366 = vsel %vm365, %v340, -inf
        %367 = vmax.xlane.f32.xlu0 %v366
        %v368 = vpop.xlane.xlu0 %367
        %v369 = vmax.f32 %v364, %v368
        %371 = vset.pattern.permute.xlu0 0
        %372 = vperm.xlu0 %371, %v369
        %v373 = vpop.permute.xlu0 %372
        %v375 = vsub.f32 %v340, %v373
        %v376 = vmul.f32 %v375, 1.442695
        %v377 = vpow.pop %v376
        %s378 = smul.u32 %s20, 8
        %s379 = sadd.s32 %s21, 1
        %s380 = smul.u32 %s379, 16
        %p381 = scmp.lt.s32.totalorder %s378, %s380
        %s382 = smul.u32 %s21, 16
        %s383 = sadd.s32 %s20, 1
        %s384 = smul.u32 %s383, 8
        %p385 = scmp.lt.s32.totalorder %s382, %s384
        %p386 = pnand %p381, %p385
        %p387 = pneg %p386
        // Predicated region
        $region45: #{tpu_custom_call.1} parent=35 // pred_check
          _
        $region46: #{tpu_custom_call.1} parent=35 // pred_check_branch
          %389 = sbr.rel (%p386) target = $region48
        $region47: #{tpu_custom_call.1} parent=35 // pred_region
          %v390 = vlaneseq
          %v391 = vshrl.u32 %v390, 7
          %v392 = vstv %s378
          %v393 = vadd.s32 %v391, %v392
          %v394 = vlaneseq
          %v395 = vand.u32 %v394, 127
          %v396 = vstv %s382
          %v397 = vadd.s32 %v395, %v396
          %vm398 = vcmp.eq.s32.totalorder %v393, %v397
          %v399 = vsel %vm398, 0.0, %v363
          %v400 = vmul.f32 %v377, %v399
          %v401 = vsel %vm365, %v400, 0.0
          %402 = vadd.xlane.f32.xlu0 %v401
          %v403 = vpop.xlane.xlu0 %402
        $region48: #{tpu_custom_call.1} parent=35 // pred_fallthru
          %v404 = vphi 0, %v403
        // Predicated region
        $region49: #{tpu_custom_call.1} parent=35 // pred_check
          %p405 = pneg %p386
        $region50: #{tpu_custom_call.1} parent=35 // pred_check_branch
          %407 = sbr.rel (%p405) target = $region52
        $region51: #{tpu_custom_call.1} parent=35 // pred_region
          %v408 = vmul.f32 %v377, %v363
          %v409 = vsel %vm365, %v408, 0.0
          %410 = vadd.xlane.f32.xlu0 %v409
          %v411 = vpop.xlane.xlu0 %410
        $region52: #{tpu_custom_call.1} parent=35 // pred_fallthru
          %v412 = vphi %v404, %v411
        %v413 = vsub.f32 %v364, %v369
        %v414 = vmul.f32 %v413, 1.442695
        %v415 = vpow.pop %v414
        %v416 = vld [vmem:[#allocation3] sm:$0xff]
        %v417 = vmul.f32 %v415, %v416
        %v418 = vadd.f32 %v417, %v412
        %vm419 = vcmask 7168
        %420 = vst.msk [vmem:[#allocation3] sm:$0xff] %vm419, %v418
        %421 = vst.msk [vmem:[#allocation2] sm:$0xff] %vm419, %v369
        // Predicated region
        $region53: #{tpu_custom_call.1} parent=35 // pred_check
          %p422 = pneg %p263
        $region54: #{tpu_custom_call.1} parent=35 // pred_check_branch
          %424 = sbr.rel (%p422) target = $region56
        $region55: #{tpu_custom_call.1} parent=35 // pred_region
          %v425 = vld [vmem:[#allocation2] sm:$0xff]
          %v426 = vld [vmem:[#allocation3] sm:$0xff]
          %v427 = vlog2.pop %v426
          %v428 = vmul.f32 %v427, 0.6931472
          %v429 = vadd.f32 %v425, %v428
          %430 = vst.msk [vmem:[%s262] sm:$0xff] %vm419, %v429
        $region56: #{tpu_custom_call.1} parent=35 // pred_fallthru
          _
        %p431 = scmp.lt.s32.totalorder %s20, 1
        %s432 = scalar_select %p431, %s20, 1
        %s433 = smul.addr %s432, 8
        %s434 = scalar_lea.vmem %s4, %s433
        // Predicated region
        $region57: #{tpu_custom_call.1} parent=35 // pred_check
          %p435 = pneg %p150
        $region58: #{tpu_custom_call.1} parent=35 // pred_check_branch
          %437 = sbr.rel (%p435) target = $region60
        $region59: #{tpu_custom_call.1} parent=35 // pred_region
          _
        $region60: #{tpu_custom_call.1} parent=35 // pred_fallthru
          _
      $region36: #{tpu_custom_call.1} parent=5 // pred_fallthru
        _
      %p438 = scmp.le.s32.totalorder 2, %s11
      // Predicated region
      $region61: #{tpu_custom_call.1} parent=5 // pred_check
        %p439 = pneg %p438
      $region62: #{tpu_custom_call.1} parent=5 // pred_check_branch
        %441 = sbr.rel (%p439) target = $region64
      $region63: #{tpu_custom_call.1} parent=5 // pred_region
        %s442 = ssub.s32 %s11, 2
        // Predicated region
        $region65: #{tpu_custom_call.1} parent=63 // pred_check
          %p443 = pneg %p156
        $region66: #{tpu_custom_call.1} parent=63 // pred_check_branch
          %445 = sbr.rel (%p443) target = $region68
        $region67: #{tpu_custom_call.1} parent=63 // pred_region
          %p446 = scmp.lt.s32.totalorder %s22, 1
          %s447 = scalar_select %p446, %s22, 1
          %s448 = smul.addr %s447, 8
          %s449 = scalar_lea.vmem %s4, %s448
        $region68: #{tpu_custom_call.1} parent=63 // pred_fallthru
          _
      $region64: #{tpu_custom_call.1} parent=5 // pred_fallthru
        _
    $region6: #{tpu_custom_call.1} parent=1 // loop_footer
      %s15 = sadd.s32 1, %s11
    $region7: #{tpu_custom_call.1} parent=1 // loop_footer_branch
      %10 = sbr.rel target = $region3
    $region8: #{tpu_custom_call.1} parent=1 // loop_exit
      _
    %450 = vsyncpa [#allocation5], 1
    %s451 = scalar_lea.sflag [#allocation5], 1
    %452 = vsyncpa %s451, 1

</llo_original>
